<compile_context>
chip_gen: v7x
topology: tpu7x:2x2x1
jax: 0.10.0
libtpu: 0.0.40
codegen_flags: <defaults>
</compile_context>

<pallas_src>
import numpy as np
import jax
import jax.numpy as jnp
from jax.experimental import pallas as pl
from jax.experimental.pallas import tpu as pltpu

NUM_JOINTS = 17
_LANES = 128

_ADJ_NP = np.array(
    [[1, 1, 0, 0, 0, 0, 0, 0, 0, 0, 0, 0, 0, 0, 0, 0, 0],
     [1, 1, 1, 0, 0, 0, 0, 0, 0, 0, 0, 0, 0, 0, 0, 0, 0],
     [0, 1, 1, 0, 0, 0, 1, 0, 0, 0, 0, 0, 0, 0, 0, 0, 0],
     [0, 0, 0, 1, 1, 0, 1, 0, 0, 0, 0, 0, 0, 0, 0, 0, 0],
     [0, 0, 0, 1, 1, 1, 0, 0, 0, 0, 0, 0, 0, 0, 0, 0, 0],
     [0, 0, 0, 0, 1, 1, 0, 0, 0, 0, 0, 0, 0, 0, 0, 0, 0],
     [0, 0, 1, 1, 0, 0, 1, 1, 0, 0, 0, 0, 0, 0, 0, 0, 0],
     [0, 0, 0, 0, 0, 0, 1, 1, 1, 0, 0, 0, 0, 0, 0, 0, 0],
     [0, 0, 0, 0, 0, 0, 0, 1, 1, 0, 0, 1, 1, 0, 0, 0, 1],
     [0, 0, 0, 0, 0, 0, 0, 0, 0, 1, 0, 0, 0, 0, 0, 0, 1],
     [0, 0, 0, 0, 0, 0, 0, 0, 0, 0, 1, 1, 0, 0, 0, 0, 0],
     [0, 0, 0, 0, 0, 0, 0, 0, 0, 0, 1, 1, 1, 0, 0, 0, 0],
     [0, 0, 0, 0, 0, 0, 0, 0, 1, 0, 0, 1, 1, 0, 0, 0, 0],
     [0, 0, 0, 0, 0, 0, 0, 0, 1, 0, 0, 0, 0, 1, 1, 0, 0],
     [0, 0, 0, 0, 0, 0, 0, 0, 0, 0, 0, 0, 0, 1, 1, 1, 0],
     [0, 0, 0, 0, 0, 0, 0, 0, 0, 0, 0, 0, 0, 0, 1, 1, 0],
     [0, 0, 0, 0, 0, 0, 0, 0, 1, 1, 0, 0, 0, 0, 0, 0, 1]],
    dtype=np.float32)


def _round_up(x, m):
    return (x + m - 1) // m * m


def _cdiv(a, b):
    return (a + b - 1) // b


def _vmem_capacity_bytes():
    try:
        return int(pltpu.get_tpu_info().vmem_capacity_bytes)
    except Exception:
        return 64 << 20            # conservative default (v7x per-TC VMEM)


# ----------------------------------------------------------------------------
# Kernel
# ----------------------------------------------------------------------------
def _make_kernel(n_chunks, lanes, tail):
    """Build the (bn-batch-block, HW-tile) kernel with static chunking/masking.

    Refs:
      x_ref:    (bn, C, bhw)   native-dtype tile (C on sublanes, HW on lanes)
      wpre_ref: (C, 17)        pre-folded (w1^T w2^T wfc1^T adj^T)/HW, f32
      wfc2_ref: (17, Cp)       fc2 weight transposed, zero-padded to Cp lanes
      o_ref:    (1, bn, Cp)    sigmoid attention scale (padded cols sliced later)
      acc_ref:  (bn, C, lanes) f32 running per-lane partial sums (VMEM scratch)
    """
    def kernel(x_ref, wpre_ref, wfc2_ref, o_ref, acc_ref):
        j = pl.program_id(1)
        last = pl.num_programs(1) - 1

        @pl.when(j == 0)
        def _init():
            acc_ref[...] = jnp.zeros_like(acc_ref)

        def accumulate(mask_tail):
            # Pure VPU adds on 128-lane chunks; cross-lane reduce deferred to finalize.
            acc = acc_ref[...]
            for c in range(n_chunks):
                off = c * lanes
                chunk = x_ref[:, :, pl.ds(off, lanes)].astype(jnp.float32)
                if mask_tail:
                    lane = jax.lax.broadcasted_iota(jnp.int32, chunk.shape, 2)
                    chunk = jnp.where(off + lane < tail, chunk, 0.0)
                acc = acc + chunk
            acc_ref[...] = acc

        if tail == 0:
            accumulate(False)
        else:
            @pl.when(j < last)
            def _full_tile():
                accumulate(False)

            @pl.when(j == last)
            def _partial_tile():
                accumulate(True)            # zero the out-of-bounds lanes before summing

        @pl.when(j == last)
        def _finalize():
            total = jnp.sum(acc_ref[...], axis=-1)          # (bn, C): single XLU reduce
            gc = jnp.dot(total, wpre_ref[...], preferred_element_type=jnp.float32)
            h = jnp.maximum(gc, 0.0)
            f2 = jnp.dot(h, wfc2_ref[...], preferred_element_type=jnp.float32)
            o_ref[...] = jax.nn.sigmoid(f2)[None]

    return kernel


# ----------------------------------------------------------------------------
# Parameter construction (mirrors the PyTorch module's parameters)
# ----------------------------------------------------------------------------
def make_params(key, channels, channels_attention):
    assert channels_attention % NUM_JOINTS == 0
    k1, k2, k3, k4 = jax.random.split(key, 4)
    return {
        # Conv2d(channels, channels_attention, 1, bias=False): weight (C1, C)
        "w1": 0.1 * jax.random.normal(k1, (channels_attention, channels), jnp.float32),
        # Conv2d(C1, C1, 1, groups=C1//17, bias=False): weight (C1, 17)
        "w2": 0.1 * jax.random.normal(k2, (channels_attention, NUM_JOINTS), jnp.float32),
        # Linear(C1, 17, bias=False): weight (17, C1)
        "wfc1": 0.1 * jax.random.normal(k3, (NUM_JOINTS, channels_attention), jnp.float32),
        # Linear(17, channels, bias=False): weight (C, 17)
        "wfc2": 0.1 * jax.random.normal(k4, (channels, NUM_JOINTS), jnp.float32),
        # e parameter, initialized to 1 (nn.init.constant_(self.e, 1))
        "e": jnp.ones((1, int((_ADJ_NP > 0).sum())), jnp.float32),
    }


def _adj_softmax(e):
    mask = _ADJ_NP > 0
    rows, cols = np.nonzero(mask)          # row-major, matches adj[self.g] = self.e
    logits = jnp.full((NUM_JOINTS, NUM_JOINTS), -9e15, dtype=jnp.float32)
    logits = logits.at[rows, cols].set(e[0])
    return jax.nn.softmax(logits, axis=1)


def _block_diag_grouped(w2, c1):
    groups = c1 // NUM_JOINTS
    full = jnp.zeros((c1, c1), dtype=jnp.float32)
    for g in range(groups):
        sl = slice(g * NUM_JOINTS, (g + 1) * NUM_JOINTS)
        full = full.at[sl, sl].set(w2[sl, :])
    return full


# ----------------------------------------------------------------------------
# Wrapper
# ----------------------------------------------------------------------------
def cgca_branch(x_nchw, params):
    """Pallas implementation of CGCA_branch.forward. Returns (N, C, 1, 1) f32."""
    N, C, H, W = x_nchw.shape
    C1 = params["w1"].shape[0]
    HW = H * W

    # Native layout & native dtype: (N, C, HW) is a free reshape, no HBM copy/upcast.
    x = x_nchw.reshape(N, C, HW)
    itemsize = int(jnp.dtype(x.dtype).itemsize)

    # --- fold every linear op that commutes with the global average pool -----
    adj_soft = _adj_softmax(params["e"])                          # (17, 17)
    w2_full = _block_diag_grouped(params["w2"], C1)               # (C1, C1)
    # mean(x) @ w1^T @ w2^T @ wfc1^T @ adj^T  ==  sum(x) @ w_pre   (1/HW folded in)
    w_pre = (params["w1"].T @ w2_full.T @ params["wfc1"].T @ adj_soft.T) / float(HW)
    w_pre = w_pre.astype(jnp.float32)                             # (C, 17) — no lane padding
    JP = NUM_JOINTS
    Cp = _round_up(C, 128)                                        # lane-dense output store
    wfc2_p = jnp.zeros((JP, Cp), jnp.float32).at[:, :C].set(params["wfc2"].T)

    # --- batch tiling: >= 2 'parallel' blocks when N >= 2 (v7x megacore), bn <= 8 ---
    if N >= 16:
        bn = 8
    else:
        bn = max(1, (N + 1) // 2)
    n_bblocks = _cdiv(N, bn)
    Np = n_bblocks * bn            # output is over-allocated; extra rows are sliced off

    # --- spatial (reduction) tiling with a generation-aware VMEM budget -------
    cap = _vmem_capacity_bytes()
    fixed = (2 * C * JP * 4            # w_pre (double-buffered)
             + 2 * JP * Cp * 4         # wfc2  (double-buffered)
             + 2 * bn * Cp * 4         # output block (double-buffered)
             + bn * C * _LANES * 4     # f32 accumulator scratch
             + (1 << 20))              # slack
    limit_target = min((cap * 3) // 4, 100 << 20)
    x_budget = max((limit_target - fixed) // 2, 128 * bn * C * itemsize)

    if HW < _LANES:
        bhw = HW                                           # tiny spatial: one full-extent tile
    else:
        bhw = (x_budget // (bn * C * itemsize)) // _LANES * _LANES
        min_bhw = max(512, 2048 // itemsize)               # keep HBM chunks per row >= ~1-2 KiB
        bhw = max(bhw, min_bhw, _LANES)
        bhw = min(bhw, _round_up(HW, _LANES))
        # hard clamp: 2x x-buffers + fixed must stay under physical VMEM
        hard = ((cap - (8 << 20) - fixed) // 2) // (bn * C * itemsize) // _LANES * _LANES
        if hard >= _LANES:
            bhw = min(bhw, hard)

    n_hw_blocks = _cdiv(HW, bhw)
    tail = HW % bhw                                        # != 0 -> last tile needs masking
    lanes = _LANES if bhw >= _LANES else bhw
    n_chunks = bhw // lanes

    needed = fixed + 2 * bn * C * bhw * itemsize + (2 << 20)
    vmem_limit = int(min(max(needed, 32 << 20), cap - (4 << 20)))

    kernel = _make_kernel(n_chunks, lanes, tail)

    cost = pl.CostEstimate(
        flops=int(N * C * HW + 4 * N * C * NUM_JOINTS),
        transcendentals=int(N * C),
        bytes_accessed=int(N * C * HW * itemsize + C * JP * 4 + JP * Cp * 4 + Np * Cp * 4))

    out = pl.pallas_call(
        kernel,
        out_shape=jax.ShapeDtypeStruct((n_bblocks, bn, Cp), jnp.float32),
        grid_spec=pltpu.PrefetchScalarGridSpec(
            num_scalar_prefetch=0,
            grid=(n_bblocks, n_hw_blocks),
            in_specs=[
                pl.BlockSpec((bn, C, bhw), lambda i, j: (i, 0, j)),
                pl.BlockSpec((C, JP), lambda i, j: (0, 0)),
                pl.BlockSpec((JP, Cp), lambda i, j: (0, 0)),
            ],
            out_specs=pl.BlockSpec((1, bn, Cp), lambda i, j: (i, 0, 0)),
            scratch_shapes=[pltpu.VMEM((bn, C, lanes), jnp.float32)],
        ),
        compiler_params=pltpu.CompilerParams(
            dimension_semantics=("parallel", "arbitrary"),
            vmem_limit_bytes=vmem_limit),
        cost_estimate=cost,
    )(x, w_pre, wfc2_p)

    return out.reshape(Np, Cp)[:N, :C].reshape(N, C, 1, 1)


# ----------------------------------------------------------------------------
# Pure-JAX reference (mirrors the PyTorch forward, unfolded per-pixel path)
# ----------------------------------------------------------------------------
def cgca_branch_ref(x_nchw, params):
    # TODO(synk): the two debug print() calls in the PyTorch forward are intentionally dropped.
    N, C, H, W = x_nchw.shape
    C1 = params["w1"].shape[0]
    adj_soft = _adj_softmax(params["e"])
    x = jnp.transpose(x_nchw.astype(jnp.float32), (0, 2, 3, 1)).reshape(N, H * W, C)
    y1 = x @ params["w1"].T                                      # conv1 (1x1)
    w2_full = _block_diag_grouped(params["w2"], C1)
    y2 = y1 @ w2_full.T                                          # grouped conv (1x1)
    avg = jnp.mean(y2, axis=1)                                   # (N, C1)
    f1 = avg @ params["wfc1"].T                                  # (N, 17)
    gc = jnp.einsum("ij,nj->ni", adj_soft, f1)                   # adj @ fc1
    f2 = jax.nn.sigmoid(jax.nn.relu(gc) @ params["wfc2"].T)      # (N, C)
    return f2.reshape(N, C, 1, 1)


if __name__ == "__main__":
    root = jax.random.PRNGKey(0)
    kx1, kp1, kx2, kp2 = jax.random.split(root, 4)

    # Case 1: f32 activations, HW a multiple of 128 (clean fast path), even batch.
    N, C, H, W, C1 = 2, 32, 16, 16, 34
    x1 = jax.random.normal(kx1, (N, C, H, W), jnp.float32)
    p1 = make_params(kp1, C, C1)
    out1 = jax.block_until_ready(cgca_branch(x1, p1))
    ref1 = cgca_branch_ref(x1, p1)
    assert out1.shape == (N, C, 1, 1)
    np.testing.assert_allclose(np.asarray(out1), np.asarray(ref1), rtol=1e-3, atol=1e-3)

    # Case 2: bf16 activations streamed natively, HW=196 (masked partial tile),
    # odd batch (partial last batch block; garbage rows sliced off).
    N, C, H, W, C1 = 3, 8, 14, 14, 17
    x2 = jax.random.normal(kx2, (N, C, H, W), jnp.float32).astype(jnp.bfloat16)
    p2 = make_params(kp2, C, C1)
    out2 = jax.block_until_ready(cgca_branch(x2, p2))
    ref2 = cgca_branch_ref(x2, p2)
    assert out2.shape == (N, C, 1, 1)
    np.testing.assert_allclose(np.asarray(out2), np.asarray(ref2), rtol=2e-3, atol=2e-3)

    print("KERNEL_OK")
</pallas_src>

<mosaic_0001>
module attributes {stable_mosaic.version = 11 : i64} {
  func.func @kernel(%arg0: i32, %arg1: i32, %arg2: memref<1x32x256xf32, #tpu.memory_space<vmem>>, %arg3: memref<32x17xf32, #tpu.memory_space<vmem>>, %arg4: memref<17x128xf32, #tpu.memory_space<vmem>>, %arg5: memref<1x1x128xf32, #tpu.memory_space<vmem>>, %arg6: memref<1x32x128xf32, #tpu.memory_space<vmem>>) attributes {dimension_semantics = [#tpu.dimension_semantics<parallel>, #tpu.dimension_semantics<arbitrary>], iteration_bounds = array<i64: 2, 1>, scalar_prefetch = 0 : i64, scratch_operands = 1 : i64, tpu.core_type = #tpu.core_type<tc>, window_params = [{transform_indices = @transform_0, window_bounds = array<i64: 1, 32, 256>}, {pipeline_mode = #tpu.pipeline_mode<synchronous>, transform_indices = @transform_1, window_bounds = array<i64: 32, 17>}, {pipeline_mode = #tpu.pipeline_mode<synchronous>, transform_indices = @transform_2, window_bounds = array<i64: 17, 128>}, {transform_indices = @transform_3, window_bounds = array<i64: 1, 1, 128>}]} {
    %c0_i32 = arith.constant 0 : i32
    %0 = arith.cmpi eq, %arg1, %c0_i32 : i32
    %1 = arith.extui %0 : i1 to i32
    %c0_i32_0 = arith.constant 0 : i32
    %2 = arith.cmpi ne, %1, %c0_i32_0 : i32
    scf.if %2 {
      %cst = arith.constant 0.000000e+00 : f32
      %12 = vector.broadcast %cst : f32 to vector<1x32x128xf32>
      %c0_13 = arith.constant 0 : index
      %c0_14 = arith.constant 0 : index
      %c0_15 = arith.constant 0 : index
      %13 = vector.load %arg6[%c0_13, %c0_14, %c0_15] : memref<1x32x128xf32, #tpu.memory_space<vmem>>, vector<1x32x128xf32>
      tpu.vector_store %arg6[%c0_13, %c0_14, %c0_15], %12 {strides = array<i32>} : memref<1x32x128xf32, #tpu.memory_space<vmem>>, vector<1x32x128xf32>,
    } else {
    }
    %c0 = arith.constant 0 : index
    %c0_1 = arith.constant 0 : index
    %c0_2 = arith.constant 0 : index
    %3 = vector.load %arg6[%c0, %c0_1, %c0_2] : memref<1x32x128xf32, #tpu.memory_space<vmem>>, vector<1x32x128xf32>
    %c0_3 = arith.constant 0 : index
    %c0_4 = arith.constant 0 : index
    %c0_5 = arith.constant 0 : index
    %4 = vector.load %arg2[%c0_3, %c0_4, %c0_5] : memref<1x32x256xf32, #tpu.memory_space<vmem>>, vector<1x32x128xf32>
    %5 = arith.addf %3, %4 : vector<1x32x128xf32>
    %c0_6 = arith.constant 0 : index
    %c0_7 = arith.constant 0 : index
    %c128 = arith.constant 128 : index
    %6 = vector.load %arg2[%c0_6, %c0_7, %c128] : memref<1x32x256xf32, #tpu.memory_space<vmem>>, vector<1x32x128xf32>
    %7 = arith.addf %5, %6 : vector<1x32x128xf32>
    %c0_8 = arith.constant 0 : index
    %c0_9 = arith.constant 0 : index
    %c0_10 = arith.constant 0 : index
    %8 = vector.load %arg6[%c0_8, %c0_9, %c0_10] : memref<1x32x128xf32, #tpu.memory_space<vmem>>, vector<1x32x128xf32>
    tpu.vector_store %arg6[%c0_8, %c0_9, %c0_10], %7 {strides = array<i32>} : memref<1x32x128xf32, #tpu.memory_space<vmem>>, vector<1x32x128xf32>,
    %c0_i32_11 = arith.constant 0 : i32
    %9 = arith.cmpi eq, %arg1, %c0_i32_11 : i32
    %10 = arith.extui %9 : i1 to i32
    %c0_i32_12 = arith.constant 0 : i32
    %11 = arith.cmpi ne, %10, %c0_i32_12 : i32
    scf.if %11 {
      %c0_13 = arith.constant 0 : index
      %c0_14 = arith.constant 0 : index
      %c0_15 = arith.constant 0 : index
      %12 = vector.load %arg6[%c0_13, %c0_14, %c0_15] : memref<1x32x128xf32, #tpu.memory_space<vmem>>, vector<1x32x128xf32>
      %cst = arith.constant dense<0.000000e+00> : vector<1x32xf32>
      %13 = vector.multi_reduction <add>, %12, %cst [2] : vector<1x32x128xf32> to vector<1x32xf32>
      %c0_16 = arith.constant 0 : index
      %c0_17 = arith.constant 0 : index
      %14 = vector.load %arg3[%c0_16, %c0_17] : memref<32x17xf32, #tpu.memory_space<vmem>>, vector<32x17xf32>
      %cst_18 = arith.constant dense<0.000000e+00> : vector<1x17xf32>
      %15 = tpu.matmul %13, %14, %cst_18 {dimension_numbers = #tpu.dot_dimension_numbers<[1], [0], [0], [1], [0, 0, 1, 1], [], []>} : vector<1x32xf32>, vector<32x17xf32>, vector<1x17xf32> -> vector<1x17xf32>
      %cst_19 = arith.constant 0.000000e+00 : f32
      %16 = vector.broadcast %cst_19 : f32 to vector<1x17xf32>
      %17 = arith.maximumf %15, %16 : vector<1x17xf32>
      %c0_20 = arith.constant 0 : index
      %c0_21 = arith.constant 0 : index
      %18 = vector.load %arg4[%c0_20, %c0_21] : memref<17x128xf32, #tpu.memory_space<vmem>>, vector<17x128xf32>
      %cst_22 = arith.constant dense<0.000000e+00> : vector<1x128xf32>
      %19 = tpu.matmul %17, %18, %cst_22 {dimension_numbers = #tpu.dot_dimension_numbers<[1], [0], [0], [1], [0, 0, 1, 1], [], []>} : vector<1x17xf32>, vector<17x128xf32>, vector<1x128xf32> -> vector<1x128xf32>
      %20 = arith.negf %19 : vector<1x128xf32>
      %21 = math.exp %20 : vector<1x128xf32>
      %cst_23 = arith.constant 1.000000e+00 : f32
      %22 = vector.broadcast %cst_23 : f32 to vector<1x128xf32>
      %23 = arith.addf %22, %21 : vector<1x128xf32>
      %24 = arith.divf %22, %23 : vector<1x128xf32>
      %25 = vector.shape_cast %24 : vector<1x128xf32> to vector<1x1x128xf32>
      %c0_24 = arith.constant 0 : index
      %c0_25 = arith.constant 0 : index
      %c0_26 = arith.constant 0 : index
      %26 = vector.load %arg5[%c0_24, %c0_25, %c0_26] : memref<1x1x128xf32, #tpu.memory_space<vmem>>, vector<1x1x128xf32>
      tpu.vector_store %arg5[%c0_24, %c0_25, %c0_26], %25 {strides = array<i32>} : memref<1x1x128xf32, #tpu.memory_space<vmem>>, vector<1x1x128xf32>,
    } else {
    }
    return
  }
  func.func @transform_0(%arg0: i32, %arg1: i32) -> (i32, i32, i32) {
    %c0_i32 = arith.constant 0 : i32
    %c0_i32_0 = arith.constant 0 : i32
    return %arg0, %c0_i32, %arg1 : i32, i32, i32
  }
  func.func @transform_1(%arg0: i32, %arg1: i32) -> (i32, i32) {
    %c0_i32 = arith.constant 0 : i32
    %c0_i32_0 = arith.constant 0 : i32
    %c0_i32_1 = arith.constant 0 : i32
    return %c0_i32, %c0_i32_0 : i32, i32
  }
  func.func @transform_2(%arg0: i32, %arg1: i32) -> (i32, i32) {
    %c0_i32 = arith.constant 0 : i32
    %c0_i32_0 = arith.constant 0 : i32
    %c0_i32_1 = arith.constant 0 : i32
    return %c0_i32, %c0_i32_0 : i32, i32
  }
  func.func @transform_3(%arg0: i32, %arg1: i32) -> (i32, i32, i32) {
    %c0_i32 = arith.constant 0 : i32
    %c0_i32_0 = arith.constant 0 : i32
    %c0_i32_1 = arith.constant 0 : i32
    return %arg0, %c0_i32, %c0_i32_0 : i32, i32, i32
  }
}

</mosaic_0001>

<llo_original>
// kernel: tpu_custom_call.1
$region0: #{tpu_custom_call.1}
  #allocation0 [shape = 'u32[]', space=smem, size = 0x4, offset = 0x4, fixed_abs, tag = 'smem constant byte address 0x4 - core index']
  #allocation1 [shape = 'u32[144,128]{1,0:T(1,128)}', space=vmem, size = 0x12000, scoped, tag = 'internal scratch']
  #allocation2 [shape = 'f32[1,32,128]{2,1,0:T(8,128)}', space=vmem, size = 0x4000, scoped, tag = 'scratch operand']
  %s0 = inlined_call_operand.hbm [shape: f32[2,32,256], index: 0, kind: input, shape index: {}]
  %s1 = inlined_call_operand.vmem [shape: f32[32,17], index: 1, kind: input, shape index: {}]
  %s2 = inlined_call_operand.vmem [shape: f32[17,128], index: 2, kind: input, shape index: {}]
  %s3 = inlined_call_operand.hbm [shape: f32[2,1,128], index: 3, kind: output, shape index: {}]
  %s4 = sld [smem:[#allocation0]]
  $region57: #{tpu_custom_call.1} parent=0
    _
  %s6 = ssub.s32 1, %s4
  %s7 = scalar_select 0, %s6, %s4
  $region1: #{tpu_custom_call.1} parent=0
    #allocation3 [shape = 'u8[65536]{0}', space=vmem, size = 0x10000, scoped, tag = 'input window, operand 0']
    #allocation4 [shape = 's32[2]{0}', space=sflag, size = 0x8, scoped, tag = 'scoped memory for tpu_custom_call.1']
    #allocation5 [shape = 's32[2]{0}', space=sflag, size = 0x8, scoped, tag = 'scoped memory for tpu_custom_call.1']
    #allocation6 [shape = 'u8[1024]{0}', space=vmem, size = 0x400, scoped, tag = 'output window, operand 0']
    %8 = vsyncpa [#allocation4], 0
    %s9 = scalar_lea.sflag [#allocation4], 1
    %10 = vsyncpa %s9, 0
    %11 = vsyncpa [#allocation5], 0
    %s12 = scalar_lea.sflag [#allocation5], 1
    %13 = vsyncpa %s12, 0
    loop: start=0, step=1, limit=4
    $region2: #{tpu_custom_call.1} parent=1 // loop_pre_header
      _
    $region3: #{tpu_custom_call.1} parent=1 // loop_header
      %s15 = sphi 0, %s19
      %p16 = scmp.ge.s32.totalorder %s15, 4
      %s22 = sphi 0, %s34
      %s23 = sphi 0, %s30
      %s24 = sphi 0, %s22
      %s25 = sphi 0, %s23
      %s26 = sphi 0, %s24
      %s27 = sphi 0, %s25
      %s39 = sphi 0, %s41
      %s42 = sphi 0, %s39
      %s43 = sphi 0, %s42
      %s59 = sphi 0, %s43
      %s63 = sphi 0, %s63
      %s65 = sphi 0, %s63
      %s66 = sphi 0, %s65
      %s80 = sphi 0, %s66
      %s84 = sphi 0, %s84
      %s86 = sphi 0, %s84
      %s87 = sphi 0, %s86
      %s101 = sphi 0, %s87
      %s107 = sphi 0, %s109
      %s110 = sphi 0, %s107
      %s111 = sphi 0, %s110
      %s127 = sphi 0, %s111
    $region4: #{tpu_custom_call.1} parent=1 // loop_header_branch
      %18 = sbr.rel (%p16) target = $region8
    $region5: #{tpu_custom_call.1} parent=1 // loop_body
      %s20 = ssub.s32 %s15, 1
      %s21 = ssub.s32 %s15, 2
      %s28 = sadd.s32 1, %s23
      %p29 = scmp.ge.s32.totalorder %s28, 1
      %s30 = scalar_select %p29, 0, %s28
      %s31 = sadd.s32 1, %s22
      %s32 = scalar_select %p29, %s31, %s22
      %p33 = scmp.ge.s32.totalorder %s32, 2
      %s34 = scalar_select %p33, 0, %s32
      %s35 = ssub.s32 %s22, %s34
      %s36 = ssub.s32 %s23, %s30
      %s37 = sor.u32 %s35, %s36
      %p38 = scmp.eq.s32.totalorder %s37, 0
      %s40 = sadd.s32 %s39, 1
      %s41 = scalar_select %p38, %s39, %s40
      %p44 = pneg %p38
      %p45 = scmp.eq.s32.totalorder %s15, 1
      %p46 = por %p44, %p45
      %p47 = scmp.ne.s32.totalorder %s39, %s42
      %p48 = scmp.eq.s32.totalorder %s15, 0
      %p49 = por %p47, %p48
      %p50 = scmp.ne.s32.totalorder %s39, %s42
      %p51 = scmp.eq.s32.totalorder %s20, 1
      %p52 = por %p50, %p51
      %p53 = scmp.ne.s32.totalorder %s42, %s43
      %p54 = scmp.eq.s32.totalorder %s20, 0
      %p55 = por %p53, %p54
      %p56 = scmp.ne.s32.totalorder %s42, %s43
      %p57 = scmp.eq.s32.totalorder %s21, 1
      %p58 = por %p56, %p57
      %p60 = scmp.ne.s32.totalorder %s43, %s59
      %p61 = scmp.eq.s32.totalorder %s21, 0
      %p62 = por %p60, %p61
      %s64 = sadd.s32 %s63, 1
      %p67 = scmp.eq.s32.totalorder %s15, 1
      %p68 = scmp.ne.s32.totalorder %s63, %s65
      %p69 = scmp.eq.s32.totalorder %s15, 0
      %p70 = por %p68, %p69
      %p71 = scmp.ne.s32.totalorder %s63, %s65
      %p72 = scmp.eq.s32.totalorder %s20, 1
      %p73 = por %p71, %p72
      %p74 = scmp.ne.s32.totalorder %s65, %s66
      %p75 = scmp.eq.s32.totalorder %s20, 0
      %p76 = por %p74, %p75
      %p77 = scmp.ne.s32.totalorder %s65, %s66
      %p78 = scmp.eq.s32.totalorder %s21, 1
      %p79 = por %p77, %p78
      %p81 = scmp.ne.s32.totalorder %s66, %s80
      %p82 = scmp.eq.s32.totalorder %s21, 0
      %p83 = por %p81, %p82
      %s85 = sadd.s32 %s84, 1
      %p88 = scmp.eq.s32.totalorder %s15, 1
      %p89 = scmp.ne.s32.totalorder %s84, %s86
      %p90 = scmp.eq.s32.totalorder %s15, 0
      %p91 = por %p89, %p90
      %p92 = scmp.ne.s32.totalorder %s84, %s86
      %p93 = scmp.eq.s32.totalorder %s20, 1
      %p94 = por %p92, %p93
      %p95 = scmp.ne.s32.totalorder %s86, %s87
      %p96 = scmp.eq.s32.totalorder %s20, 0
      %p97 = por %p95, %p96
      %p98 = scmp.ne.s32.totalorder %s86, %s87
      %p99 = scmp.eq.s32.totalorder %s21, 1
      %p100 = por %p98, %p99
      %p102 = scmp.ne.s32.totalorder %s87, %s101
      %p103 = scmp.eq.s32.totalorder %s21, 0
      %p104 = por %p102, %p103
      %s105 = ssub.s32 %s22, %s34
      %p106 = scmp.eq.s32.totalorder %s105, 0
      %s108 = sadd.s32 %s107, 1
      %s109 = scalar_select %p106, %s107, %s108
      %p112 = pneg %p106
      %p113 = scmp.eq.s32.totalorder %s15, 1
      %p114 = por %p112, %p113
      %p115 = scmp.ne.s32.totalorder %s107, %s110
      %p116 = scmp.eq.s32.totalorder %s15, 0
      %p117 = por %p115, %p116
      %p118 = scmp.ne.s32.totalorder %s107, %s110
      %p119 = scmp.eq.s32.totalorder %s20, 1
      %p120 = por %p118, %p119
      %p121 = scmp.ne.s32.totalorder %s110, %s111
      %p122 = scmp.eq.s32.totalorder %s20, 0
      %p123 = por %p121, %p122
      %p124 = scmp.ne.s32.totalorder %s110, %s111
      %p125 = scmp.eq.s32.totalorder %s21, 1
      %p126 = por %p124, %p125
      %p128 = scmp.ne.s32.totalorder %s111, %s127
      %p129 = scmp.eq.s32.totalorder %s21, 0
      %p130 = por %p128, %p129
      %p131 = scmp.le.s32.totalorder 1, %s15
      %p132 = scmp.lt.s32.totalorder %s15, 3
      %p133 = pnand %p131, %p132
      %p134 = pneg %p133
      // Predicated region
      $region9: #{tpu_custom_call.1} parent=5 // pred_check
        _
      $region10: #{tpu_custom_call.1} parent=5 // pred_check_branch
        %136 = sbr.rel (%p133) target = $region12
      $region11: #{tpu_custom_call.1} parent=5 // pred_region
        %s137 = ssub.s32 %s15, 1
        // Predicated region
        $region13: #{tpu_custom_call.1} parent=11 // pred_check
          %p138 = pneg %p76
        $region14: #{tpu_custom_call.1} parent=11 // pred_check_branch
          %140 = sbr.rel (%p138) target = $region16
        $region15: #{tpu_custom_call.1} parent=11 // pred_region
          _
        $region16: #{tpu_custom_call.1} parent=11 // pred_fallthru
          _
        // Predicated region
        $region17: #{tpu_custom_call.1} parent=11 // pred_check
          %p141 = pneg %p97
        $region18: #{tpu_custom_call.1} parent=11 // pred_check_branch
          %143 = sbr.rel (%p141) target = $region20
        $region19: #{tpu_custom_call.1} parent=11 // pred_region
          _
        $region20: #{tpu_custom_call.1} parent=11 // pred_fallthru
          _
      $region12: #{tpu_custom_call.1} parent=5 // pred_fallthru
        _
      %p144 = scmp.lt.s32.totalorder %s15, 2
      // Predicated region
      $region21: #{tpu_custom_call.1} parent=5 // pred_check
        %p145 = pneg %p144
      $region22: #{tpu_custom_call.1} parent=5 // pred_check_branch
        %147 = sbr.rel (%p145) target = $region24
      $region23: #{tpu_custom_call.1} parent=5 // pred_region
        // Predicated region
        $region25: #{tpu_custom_call.1} parent=23 // pred_check
          %p148 = pneg %p49
        $region26: #{tpu_custom_call.1} parent=23 // pred_check_branch
          %150 = sbr.rel (%p148) target = $region28
        $region27: #{tpu_custom_call.1} parent=23 // pred_region
          %s151 = sand.u32 %s39, 1
          %s152 = scalar_lea.sflag [#allocation4], %s151
          %s153 = sand.u32 %s39, 1
          %s154 = smul.addr %s153, 64
          %s155 = scalar_lea.vmem [#allocation3], %s154
          %s156 = smul.u32 2, %s23
          %s158 = ssub.s32 1024, 1024
          %159 = vsyncadd %s152, %s158
          %s160 = smul.addr %s22, 8
          %s161 = sadd.s32 %s156, %s160
          %s162 = smul.addr %s161, 128
          %s163 = scalar_lea.hbm %s0, %s162
          %s164 = sshll.u32 %s155, 4
          %s165 = int_to_ptr.vmem [resolvable:$true] %s164
          %170 = dma.hbm_to_vmem [thread:$0]  %s163, 1024, %s165, %s152, 256, 256, 16
        $region28: #{tpu_custom_call.1} parent=23 // pred_fallthru
          _
      $region24: #{tpu_custom_call.1} parent=5 // pred_fallthru
        _
      %p171 = scmp.le.s32.totalorder 1, %s15
      %p172 = scmp.lt.s32.totalorder %s15, 3
      %p173 = pnand %p171, %p172
      %p174 = pneg %p173
      // Predicated region
      $region29: #{tpu_custom_call.1} parent=5 // pred_check
        _
      $region30: #{tpu_custom_call.1} parent=5 // pred_check_branch
        %176 = sbr.rel (%p173) target = $region32
      $region31: #{tpu_custom_call.1} parent=5 // pred_region
        %s177 = ssub.s32 %s15, 1
        %s178 = sand.u32 %s42, 1
        %s179 = scalar_lea.sflag [#allocation4], %s178
        %s180 = sand.u32 %s42, 1
        %s181 = smul.addr %s180, 64
        %s182 = scalar_lea.vmem [#allocation3], %s181
        // Predicated region
        $region33: #{tpu_custom_call.1} parent=31 // pred_check
          %p183 = pneg %p55
        $region34: #{tpu_custom_call.1} parent=31 // pred_check_branch
          %185 = sbr.rel (%p183) target = $region36
        $region35: #{tpu_custom_call.1} parent=31 // pred_region
          %186 = dma.done %s179, 1024
        $region36: #{tpu_custom_call.1} parent=31 // pred_fallthru
          _
        %s187 = sand.u32 %s42, 1
        %s188 = scalar_lea.sflag [#allocation4], %s187
        %s189 = sand.u32 %s42, 1
        %s190 = smul.addr %s189, 64
        %s191 = scalar_lea.vmem [#allocation3], %s190
        %p192 = pneg %p55
        %p193 = pneg %p52
        %p194 = pneg %p76
        %p195 = pneg %p73
        %p196 = pneg %p97
        %p197 = pneg %p94
        %p198 = pneg %p123
        %p199 = pneg %p120
        %s200 = sand.u32 %s110, 1
        %s201 = scalar_lea.sflag [#allocation5], %s200
        %s202 = sand.u32 %s110, 1
        %s203 = scalar_lea.vmem [#allocation6], %s202
        %s204 = smul.u32 2, %s25
        %p205 = scmp.eq.s32.totalorder %s25, 0
        // Predicated region
        $region37: #{tpu_custom_call.1} parent=31 // pred_check
          %p206 = pneg %p205
        $region38: #{tpu_custom_call.1} parent=31 // pred_check_branch
          %208 = sbr.rel (%p206) target = $region40
        $region39: #{tpu_custom_call.1} parent=31 // pred_region
          %209 = vst [vmem:[#allocation2] sm:$0xff] 0.0
          %210 = vst [vmem:[#allocation2 + $0x8] sm:$0xff] 0.0
          %211 = vst [vmem:[#allocation2 + $0x10] sm:$0xff] 0.0
          %212 = vst [vmem:[#allocation2 + $0x18] sm:$0xff] 0.0
        $region40: #{tpu_custom_call.1} parent=31 // pred_fallthru
          _
        %v213 = vld [vmem:[#allocation2] sm:$0xff]
        %v214 = vld [vmem:[#allocation2 + $0x8] sm:$0xff]
        %v215 = vld [vmem:[#allocation2 + $0x10] sm:$0xff]
        %v216 = vld [vmem:[#allocation2 + $0x18] sm:$0xff]
        %v217 = vld [vmem:[%s182] sm:$0xff]
        %v218 = vld [vmem:[%s182 + $0x10] sm:$0xff]
        %v219 = vld [vmem:[%s182 + $0x20] sm:$0xff]
        %v220 = vld [vmem:[%s182 + $0x30] sm:$0xff]
        %v221 = vadd.f32 %v213, %v217
        %v222 = vadd.f32 %v214, %v218
        %v223 = vadd.f32 %v215, %v219
        %v224 = vadd.f32 %v216, %v220
        %v225 = vld [vmem:[%s182 + $0x8] sm:$0xff]
        %v226 = vld [vmem:[%s182 + $0x18] sm:$0xff]
        %v227 = vld [vmem:[%s182 + $0x28] sm:$0xff]
        %v228 = vld [vmem:[%s182 + $0x38] sm:$0xff]
        %v229 = vadd.f32 %v221, %v225
        %v230 = vadd.f32 %v222, %v226
        %v231 = vadd.f32 %v223, %v227
        %v232 = vadd.f32 %v224, %v228
        %233 = vst [vmem:[#allocation2] sm:$0xff] %v229
        %234 = vst [vmem:[#allocation2 + $0x8] sm:$0xff] %v230
        %235 = vst [vmem:[#allocation2 + $0x10] sm:$0xff] %v231
        %236 = vst [vmem:[#allocation2 + $0x18] sm:$0xff] %v232
        // Predicated region
        $region41: #{tpu_custom_call.1} parent=31 // pred_check
          %p237 = pneg %p205
        $region42: #{tpu_custom_call.1} parent=31 // pred_check_branch
          %239 = sbr.rel (%p237) target = $region44
        $region43: #{tpu_custom_call.1} parent=31 // pred_region
          %v240 = vld [vmem:[#allocation2] sm:$0xff]
          %v241 = vld [vmem:[#allocation2 + $0x8] sm:$0xff]
          %v242 = vld [vmem:[#allocation2 + $0x10] sm:$0xff]
          %v243 = vld [vmem:[#allocation2 + $0x18] sm:$0xff]
          %244 = vadd.xlane.f32.xlu0 %v240
          %v245 = vpop.xlane.xlu0 %244
          %246 = vadd.xlane.f32.xlu0 %v241
          %v247 = vpop.xlane.xlu0 %246
          %248 = vadd.xlane.f32.xlu0 %v242
          %v249 = vpop.xlane.xlu0 %248
          %250 = vadd.xlane.f32.xlu0 %v243
          %v251 = vpop.xlane.xlu0 %250
          %v252 = vld [vmem:[%s1] sm:$0xff]
          %v253 = vld [vmem:[%s1 + $0x8] sm:$0xff]
          %v254 = vld [vmem:[%s1 + $0x10] sm:$0xff]
          %v255 = vld [vmem:[%s1 + $0x18] sm:$0xff]
          %v260 = vlaneseq
          %v261 = vand.u32 %v260, 127
          %v262 = vlaneseq
          %v263 = vshrl.u32 %v262, 7
          %v264 = vsub.s32 %v261, %v263
          %v265 = vrot.slane %v245, %v264
          %v266 = vadd.s32 %v261, 4294967288
          %v267 = vlaneseq
          %v268 = vshrl.u32 %v267, 7
          %v269 = vsub.s32 %v266, %v268
          %v270 = vrot.slane %v247, %v269
          %vm271 = vcmask 130112
          %v272 = vsel %vm271, %v270, %v265
          %v273 = vadd.s32 %v261, 4294967280
          %v274 = vlaneseq
          %v275 = vshrl.u32 %v274, 7
          %v276 = vsub.s32 %v273, %v275
          %v277 = vrot.slane %v249, %v276
          %vm278 = vcmask 195712
          %v279 = vsel %vm278, %v277, %v272
          %v280 = vadd.s32 %v261, 4294967272
          %v281 = vlaneseq
          %v282 = vshrl.u32 %v281, 7
          %v283 = vsub.s32 %v280, %v282
          %v284 = vrot.slane %v251, %v283
          %vm285 = vcmask 261312
          %v286 = vsel %vm285, %v284, %v279
          %vm287 = vcmask 261120
          %v288 = vsel %vm287, %v286, 0
          %290 = vmatprep.subr.mxu0 0.0
          %291 = vmatpush1.msra.mxu0 %v252
          %292 = vmatprep.subr.mxu0 0.0
          %293 = vmatpush1.msra.mxu0 %v253
          %294 = vmatprep.subr.mxu0 0.0
          %295 = vmatpush1.msra.mxu0 %v254
          %296 = vmatprep.subr.mxu0 0.0
          %297 = vmatpush1.msra.mxu0 %v255
          %298 = vmatprep.subr.mxu0 0.0
          %299 = vmatpush1.msra.mxu0 0.0
          %300 = vmatprep.subr.mxu0 0.0
          %301 = vmatpush1.msra.mxu0 0.0
          %302 = vmatprep.subr.mxu0 0.0
          %303 = vmatpush1.msra.mxu0 0.0
          %304 = vmatprep.subr.mxu0 0.0
          %305 = vmatpush1.msra.mxu0 0.0
          %306 = vmatprep.subr.mxu0 0.0
          %307 = vmatpush1.msra.mxu0 0.0
          %308 = vmatprep.subr.mxu0 0.0
          %309 = vmatpush1.msra.mxu0 0.0
          %310 = vmatprep.subr.mxu0 0.0
          %311 = vmatpush1.msra.mxu0 0.0
          %312 = vmatprep.subr.mxu0 0.0
          %313 = vmatpush1.msra.mxu0 0.0
          %314 = vmatprep.subr.mxu0 0.0
          %315 = vmatpush1.msra.mxu0 0.0
          %316 = vmatprep.subr.mxu0 0.0
          %317 = vmatpush1.msra.mxu0 0.0
          %318 = vmatprep.subr.mxu0 0.0
          %319 = vmatpush1.msra.mxu0 0.0
          %320 = vmatprep.subr.mxu0 0.0
          %321 = vmatpush1.msra.mxu0 0.0
          %322 = vmatprep.subr.mxu0 0.0
          %323 = vmatpush1.msra.mxu0 0.0
          %324 = vmatprep.subr.mxu0 0.0
          %325 = vmatpush1.msra.mxu0 0.0
          %326 = vmatprep.subr.mxu0 0.0
          %327 = vmatpush1.msra.mxu0 0.0
          %328 = vmatprep.subr.mxu0 0.0
          %329 = vmatpush1.msra.mxu0 0.0
          %330 = vmatprep.subr.mxu0 0.0
          %331 = vmatpush1.msra.mxu0 0.0
          %332 = vmatprep.subr.mxu0 0.0
          %333 = vmatpush1.msra.mxu0 0.0
          %334 = vmatprep.subr.mxu0 0.0
          %335 = vmatpush1.msra.mxu0 0.0
          %336 = vmatprep.subr.mxu0 0.0
          %337 = vmatpush1.msra.mxu0 0.0
          %338 = vmatprep.subr.mxu0 0.0
          %339 = vmatpush1.msra.mxu0 0.0
          %340 = vmatprep.subr.mxu0 0.0
          %341 = vmatpush1.msra.mxu0 0.0
          %342 = vmatprep.subr.mxu0 0.0
          %343 = vmatpush1.msra.mxu0 0.0
          %344 = vmatprep.subr.mxu0 0.0
          %345 = vmatpush1.msra.mxu0 0.0
          %346 = vmatprep.subr.mxu0 0.0
          %347 = vmatpush1.msra.mxu0 0.0
          %348 = vmatprep.subr.mxu0 0.0
          %349 = vmatpush1.msra.mxu0 0.0
          %350 = vmatprep.subr.mxu0 0.0
          %351 = vmatpush1.msra.mxu0 0.0
          %352 = vmatprep.subr.mxu0 0.0
          %353 = vmatpush1.msra.mxu0 0.0
          %354 = vmatprep.mubr.f32.mxu0 0.0
          %355 = vmatmul.mubr.f32.gmra.mrb[0].mxu0 %v288
          %v356 = vpop.f32.mrb[0].mxu0
          %v357 = vadd.f32 0.0, %v356
          %v358 = vpop.f32.mrb[0].mxu0
          %359 = vdwg.mxu0
          %v360 = vmax.f32 %v357, 0.0
          %v361 = vld [vmem:[%s2] sm:$0xff]
          %v362 = vld [vmem:[%s2 + $0x8] sm:$0xff]
          %v363 = vld [vmem:[%s2 + $0x10] sm:$0x1]
          %vm364 = vcmask 138240
          %v366 = vsel %vm364, %v360, 0
          %vm368 = vcmask 1040384
          %v370 = vsel %vm368, %v363, 0
          %372 = vmatprep.subr.mxu0 0.0
          %373 = vmatpush1.msra.mxu0 %v361
          %374 = vmatprep.subr.mxu0 0.0
          %375 = vmatpush1.msra.mxu0 %v362
          %376 = vmatprep.subr.mxu0 0.0
          %377 = vmatpush1.msra.mxu0 %v370
          %378 = vmatprep.subr.mxu0 0.0
          %379 = vmatpush1.msra.mxu0 0.0
          %380 = vmatprep.subr.mxu0 0.0
          %381 = vmatpush1.msra.mxu0 0.0
          %382 = vmatprep.subr.mxu0 0.0
          %383 = vmatpush1.msra.mxu0 0.0
          %384 = vmatprep.subr.mxu0 0.0
          %385 = vmatpush1.msra.mxu0 0.0
          %386 = vmatprep.subr.mxu0 0.0
          %387 = vmatpush1.msra.mxu0 0.0
          %388 = vmatprep.subr.mxu0 0.0
          %389 = vmatpush1.msra.mxu0 0.0
          %390 = vmatprep.subr.mxu0 0.0
          %391 = vmatpush1.msra.mxu0 0.0
          %392 = vmatprep.subr.mxu0 0.0
          %393 = vmatpush1.msra.mxu0 0.0
          %394 = vmatprep.subr.mxu0 0.0
          %395 = vmatpush1.msra.mxu0 0.0
          %396 = vmatprep.subr.mxu0 0.0
          %397 = vmatpush1.msra.mxu0 0.0
          %398 = vmatprep.subr.mxu0 0.0
          %399 = vmatpush1.msra.mxu0 0.0
          %400 = vmatprep.subr.mxu0 0.0
          %401 = vmatpush1.msra.mxu0 0.0
          %402 = vmatprep.subr.mxu0 0.0
          %403 = vmatpush1.msra.mxu0 0.0
          %404 = vmatprep.subr.mxu0 0.0
          %405 = vmatpush1.msra.mxu0 0.0
          %406 = vmatprep.subr.mxu0 0.0
          %407 = vmatpush1.msra.mxu0 0.0
          %408 = vmatprep.subr.mxu0 0.0
          %409 = vmatpush1.msra.mxu0 0.0
          %410 = vmatprep.subr.mxu0 0.0
          %411 = vmatpush1.msra.mxu0 0.0
          %412 = vmatprep.subr.mxu0 0.0
          %413 = vmatpush1.msra.mxu0 0.0
          %414 = vmatprep.subr.mxu0 0.0
          %415 = vmatpush1.msra.mxu0 0.0
          %416 = vmatprep.subr.mxu0 0.0
          %417 = vmatpush1.msra.mxu0 0.0
          %418 = vmatprep.subr.mxu0 0.0
          %419 = vmatpush1.msra.mxu0 0.0
          %420 = vmatprep.subr.mxu0 0.0
          %421 = vmatpush1.msra.mxu0 0.0
          %422 = vmatprep.subr.mxu0 0.0
          %423 = vmatpush1.msra.mxu0 0.0
          %424 = vmatprep.subr.mxu0 0.0
          %425 = vmatpush1.msra.mxu0 0.0
          %426 = vmatprep.subr.mxu0 0.0
          %427 = vmatpush1.msra.mxu0 0.0
          %428 = vmatprep.subr.mxu0 0.0
          %429 = vmatpush1.msra.mxu0 0.0
          %430 = vmatprep.subr.mxu0 0.0
          %431 = vmatpush1.msra.mxu0 0.0
          %432 = vmatprep.subr.mxu0 0.0
          %433 = vmatpush1.msra.mxu0 0.0
          %434 = vmatprep.subr.mxu0 0.0
          %435 = vmatpush1.msra.mxu0 0.0
          %436 = vmatprep.mubr.f32.mxu0 0.0
          %437 = vmatmul.mubr.f32.gmra.mrb[0].mxu0 %v366
          %v438 = vpop.f32.mrb[0].mxu0
          %v439 = vadd.f32 0.0, %v438
          %v440 = vpop.f32.mrb[0].mxu0
          %441 = vdwg.mxu0
          %v442 = vxor.u32 %v439, 2147483648
          %v443 = vmul.f32 %v442, 1.442695
          %v444 = vpow.pop %v443
          %v445 = vadd.f32 %v444, 1.0
          %v446 = vrcp.pop %v445
          %v447 = vmul.f32 1.0, %v446
          %448 = vst [vmem:[%s203] sm:$0x1] %v447
        $region44: #{tpu_custom_call.1} parent=31 // pred_fallthru
          _
        %s449 = sand.u32 %s110, 1
        %s450 = scalar_lea.sflag [#allocation5], %s449
        %s451 = sand.u32 %s110, 1
        %s452 = scalar_lea.vmem [#allocation6], %s451
        // Predicated region
        $region45: #{tpu_custom_call.1} parent=31 // pred_check
          %p453 = pneg %p120
        $region46: #{tpu_custom_call.1} parent=31 // pred_check_branch
          %455 = sbr.rel (%p453) target = $region48
        $region47: #{tpu_custom_call.1} parent=31 // pred_region
          %s457 = ssub.s32 16, 16
          %458 = vsyncadd %s450, %s457
          %s459 = smul.addr %s24, 16
          %s460 = scalar_lea.hbm %s3, %s459
          %s462 = sshll.u32 %s452, 4
          %s463 = int_to_ptr.vmem [resolvable:$true] %s462
          %465 = dma.vmem_to_hbm [thread:$0]  %s463, 16, %s460, %s450
        $region48: #{tpu_custom_call.1} parent=31 // pred_fallthru
          _
      $region32: #{tpu_custom_call.1} parent=5 // pred_fallthru
        _
      %p466 = scmp.le.s32.totalorder 2, %s15
      // Predicated region
      $region49: #{tpu_custom_call.1} parent=5 // pred_check
        %p467 = pneg %p466
      $region50: #{tpu_custom_call.1} parent=5 // pred_check_branch
        %469 = sbr.rel (%p467) target = $region52
      $region51: #{tpu_custom_call.1} parent=5 // pred_region
        %s470 = ssub.s32 %s15, 2
        // Predicated region
        $region53: #{tpu_custom_call.1} parent=51 // pred_check
          %p471 = pneg %p126
        $region54: #{tpu_custom_call.1} parent=51 // pred_check_branch
          %473 = sbr.rel (%p471) target = $region56
        $region55: #{tpu_custom_call.1} parent=51 // pred_region
          %s474 = sand.u32 %s111, 1
          %s475 = scalar_lea.sflag [#allocation5], %s474
          %s476 = sand.u32 %s111, 1
          %s477 = scalar_lea.vmem [#allocation6], %s476
          %478 = dma.done %s475, 16
        $region56: #{tpu_custom_call.1} parent=51 // pred_fallthru
          _
      $region52: #{tpu_custom_call.1} parent=5 // pred_fallthru
        _
    $region6: #{tpu_custom_call.1} parent=1 // loop_footer
      %s19 = sadd.s32 1, %s15
    $region7: #{tpu_custom_call.1} parent=1 // loop_footer_branch
      %14 = sbr.rel target = $region3
    $region8: #{tpu_custom_call.1} parent=1 // loop_exit
      _
    %479 = vsyncpa [#allocation4], 1
    %s480 = scalar_lea.sflag [#allocation4], 1
    %481 = vsyncpa %s480, 1
    %482 = vsyncpa [#allocation5], 1
    %s483 = scalar_lea.sflag [#allocation5], 1
    %484 = vsyncpa %s483, 1

</llo_original>
